<compile_context>
chip_gen: v6e
topology: v6e:2x2x1
jax: 0.10.0
libtpu: 0.0.40
codegen_flags: <defaults>
</compile_context>

<pallas_src>
import jax
import jax.numpy as jnp
from jax.experimental import pallas as pl
from jax.experimental.pallas import tpu as pltpu


def _round_up(x, m):
    return (x + m - 1) // m * m


def _actor_kernel(x_ref, w1_ref, w2_ref, wh_ref, out_ref):
    # Whole forward pass for one batch tile: 3 MXU matmuls + 2 VPU ReLUs.
    # Biases ride the MXU via the ones-column trick (see pack_params), so every
    # operand is a whole, (8,128)-aligned VMEM ref (no slices, no bias adds).
    h = jnp.maximum(
        jnp.dot(x_ref[...], w1_ref[...], preferred_element_type=jnp.float32), 0.0)
    h = jnp.maximum(
        jnp.dot(h, w2_ref[...], preferred_element_type=jnp.float32), 0.0)
    out_ref[...] = jnp.dot(h, wh_ref[...], preferred_element_type=jnp.float32)


def pack_params(params):
    """Pack PyTorch-layout params (W:[out,in], b:[out]) ONCE into 3 kernel arrays.

    Layout (all f32, every dim (8,128)-aligned):
      w1p: [S_in, H1p]  rows 0..S-1 = W1^T, row S = b1,  w1p[S, H1] = 1.0
      w2p: [H1p,  H2p]  rows 0..H1-1 = W2^T, row H1 = b2, w2p[H1, H2] = 1.0
      whp: [H2p,  OUTp] rows 0..H2-1 = [Wmu^T | Wsg^T], row H2 = [bmu | bsg]
    with S_in = round_up(S+1, 8) (the wrapper appends a ones column to the state),
    H1p = round_up(H1+1, 128), H2p = round_up(H2+1, 128), OUTp = round_up(2A, 128).
    The "1.0" entries re-create the ones column after each layer so every bias is
    applied inside its matmul.
    """
    w1, b1, w2, b2, wmu, bmu, wsg, bsg = params
    S, H1 = w1.shape[1], w1.shape[0]
    H2 = w2.shape[0]
    A = wmu.shape[0]

    s_in = _round_up(S + 1, 8)
    h1p = _round_up(H1 + 1, 128)
    h2p = _round_up(H2 + 1, 128)
    outp = _round_up(2 * A, 128)

    w1p = jnp.zeros((s_in, h1p), jnp.float32)
    w1p = w1p.at[:S, :H1].set(w1.T.astype(jnp.float32))
    w1p = w1p.at[S, :H1].set(b1.astype(jnp.float32))
    w1p = w1p.at[S, H1].set(1.0)                     # ones column -> layer 2

    w2p = jnp.zeros((h1p, h2p), jnp.float32)
    w2p = w2p.at[:H1, :H2].set(w2.T.astype(jnp.float32))
    w2p = w2p.at[H1, :H2].set(b2.astype(jnp.float32))
    w2p = w2p.at[H1, H2].set(1.0)                    # ones column -> head

    whp = jnp.zeros((h2p, outp), jnp.float32)
    whp = whp.at[:H2, :A].set(wmu.T.astype(jnp.float32))
    whp = whp.at[:H2, A:2 * A].set(wsg.T.astype(jnp.float32))
    whp = whp.at[H2, :A].set(bmu.astype(jnp.float32))
    whp = whp.at[H2, A:2 * A].set(bsg.astype(jnp.float32))

    dims = {"num_states": S, "num_actions": A, "s_in": s_in, "out_pad": outp}
    return (w1p, w2p, whp), dims


def actor_forward(state, packed, dims, *, block_b=512):
    """state: [B, num_states] f32. Returns (mean, var), each [B, num_actions] f32."""
    w1p, w2p, whp = packed
    S = dims["num_states"]
    A = dims["num_actions"]
    s_in = dims["s_in"]
    outp = dims["out_pad"]
    B = state.shape[0]

    # Batch tiling: large (up to 512-row) tiles so the launch is not per-grid-step
    # overhead bound; for multi-tile grids round the tile count up to an even
    # number so v7x's two TensorCores split the batch evenly (harmless on v5e/v6e).
    B8 = _round_up(B, 8)
    TB = min(block_b, B8)
    num_tiles = -(-B8 // TB)
    if num_tiles > 1 and num_tiles % 2 == 1:
        num_tiles += 1
    B_pad = num_tiles * TB

    # Append the ones column (carries fc1's bias through the first matmul) and
    # zero-pad features/rows. Tiny wrapper-side op, O(B * s_in) bytes.
    x = jnp.concatenate(
        [state.astype(jnp.float32), jnp.ones((B, 1), jnp.float32)], axis=1)
    x = jnp.pad(x, ((0, B_pad - B), (0, s_in - (S + 1))))

    out = pl.pallas_call(
        _actor_kernel,
        out_shape=jax.ShapeDtypeStruct((B_pad, outp), jnp.float32),
        grid=(num_tiles,),
        in_specs=[
            pl.BlockSpec((TB, s_in), lambda i: (i, 0)),   # batch tile, pipelined
            pl.BlockSpec(w1p.shape, lambda i: (0, 0)),    # weights resident in VMEM
            pl.BlockSpec(w2p.shape, lambda i: (0, 0)),
            pl.BlockSpec(whp.shape, lambda i: (0, 0)),
        ],
        out_specs=pl.BlockSpec((TB, outp), lambda i: (i, 0)),
        compiler_params=pltpu.CompilerParams(
            dimension_semantics=("parallel",)),
    )(x, w1p, w2p, whp)

    mean = out[:B, :A]
    var = out[:B, A:2 * A]
    return mean, var


def init_params(key, num_states, num_actions, hidden_units_1, hidden_units_2):
    """PyTorch-convention params: weight [out, in], bias [out],
    U[-1/sqrt(fan_in), 1/sqrt(fan_in)] like nn.Linear's default init."""
    def linear(key, fan_in, fan_out):
        kw, kb = jax.random.split(key)
        bound = 1.0 / jnp.sqrt(jnp.float32(fan_in))
        w = jax.random.uniform(kw, (fan_out, fan_in), jnp.float32, -bound, bound)
        b = jax.random.uniform(kb, (fan_out,), jnp.float32, -bound, bound)
        return w, b

    k1, k2, k3, k4 = jax.random.split(key, 4)
    w1, b1 = linear(k1, num_states, hidden_units_1)
    w2, b2 = linear(k2, hidden_units_1, hidden_units_2)
    wmu, bmu = linear(k3, hidden_units_2, num_actions)
    wsg, bsg = linear(k4, hidden_units_2, num_actions)
    return (w1, b1, w2, b2, wmu, bmu, wsg, bsg)


def actor_reference(state, params):
    """Pure-JAX reference matching the PyTorch forward (sigma head is the raw
    linear output, exactly as in the original module)."""
    w1, b1, w2, b2, wmu, bmu, wsg, bsg = params
    h1 = jnp.maximum(state @ w1.T + b1, 0.0)
    h2 = jnp.maximum(h1 @ w2.T + b2, 0.0)
    return h2 @ wmu.T + bmu, h2 @ wsg.T + bsg


if __name__ == "__main__":
    # Small shapes consistent with the module's forward.
    batch = 8
    num_states = 32
    num_actions = 8
    hidden_units_1 = 64
    hidden_units_2 = 64

    key = jax.random.PRNGKey(0)
    k_state, k_params, k_big = jax.random.split(key, 3)

    params = init_params(k_params, num_states, num_actions,
                         hidden_units_1, hidden_units_2)

    # Pack once (hoisted out of the forward path) and materialize the packed weights.
    packed, dims = pack_params(params)
    packed = jax.block_until_ready(packed)

    # Small-batch path (single grid step).
    state = jax.random.normal(k_state, (batch, num_states), jnp.float32)
    mean, var = actor_forward(state, packed, dims)
    jax.block_until_ready((mean, var))
    mean_ref, var_ref = actor_reference(state, params)
    assert mean.shape == (batch, num_actions) and var.shape == (batch, num_actions)
    assert jnp.allclose(mean, mean_ref, atol=1e-5, rtol=1e-5)
    assert jnp.allclose(var, var_ref, atol=1e-5, rtol=1e-5)

    # Larger, non-multiple batch: exercises padding + even multi-tile parallel grid.
    big_b = 1000
    state_big = jax.random.normal(k_big, (big_b, num_states), jnp.float32)
    mean_b, var_b = actor_forward(state_big, packed, dims)
    jax.block_until_ready((mean_b, var_b))
    mean_br, var_br = actor_reference(state_big, params)
    assert mean_b.shape == (big_b, num_actions) and var_b.shape == (big_b, num_actions)
    assert jnp.allclose(mean_b, mean_br, atol=1e-5, rtol=1e-5)
    assert jnp.allclose(var_b, var_br, atol=1e-5, rtol=1e-5)

    # TODO(synk): sample_actions (Normal sampling / log_prob / clamp) is host-side
    # policy logic, not part of the network forward; implement with jax.random if needed.
    print("KERNEL_OK")
</pallas_src>

<mosaic_0001>
module attributes {stable_mosaic.version = 11 : i64} {
  func.func @_actor_kernel(%arg0: i32, %arg1: memref<8x40xf32, #tpu.memory_space<vmem>>, %arg2: memref<40x128xf32, #tpu.memory_space<vmem>>, %arg3: memref<128x128xf32, #tpu.memory_space<vmem>>, %arg4: memref<128x128xf32, #tpu.memory_space<vmem>>, %arg5: memref<8x128xf32, #tpu.memory_space<vmem>>) attributes {dimension_semantics = [#tpu.dimension_semantics<parallel>], iteration_bounds = array<i64: 1>, scalar_prefetch = 0 : i64, scratch_operands = 0 : i64, tpu.core_type = #tpu.core_type<tc>, window_params = [{transform_indices = @transform_0, window_bounds = array<i64: 8, 40>}, {pipeline_mode = #tpu.pipeline_mode<synchronous>, transform_indices = @transform_1, window_bounds = array<i64: 40, 128>}, {pipeline_mode = #tpu.pipeline_mode<synchronous>, transform_indices = @transform_2, window_bounds = array<i64: 128, 128>}, {pipeline_mode = #tpu.pipeline_mode<synchronous>, transform_indices = @transform_3, window_bounds = array<i64: 128, 128>}, {transform_indices = @transform_4, window_bounds = array<i64: 8, 128>}]} {
    %c0 = arith.constant 0 : index
    %c0_0 = arith.constant 0 : index
    %0 = vector.load %arg1[%c0, %c0_0] : memref<8x40xf32, #tpu.memory_space<vmem>>, vector<8x40xf32>
    %c0_1 = arith.constant 0 : index
    %c0_2 = arith.constant 0 : index
    %1 = vector.load %arg2[%c0_1, %c0_2] : memref<40x128xf32, #tpu.memory_space<vmem>>, vector<40x128xf32>
    %cst = arith.constant dense<0.000000e+00> : vector<8x128xf32>
    %2 = tpu.matmul %0, %1, %cst {dimension_numbers = #tpu.dot_dimension_numbers<[1], [0], [0], [1], [0, 0, 1, 1], [], []>} : vector<8x40xf32>, vector<40x128xf32>, vector<8x128xf32> -> vector<8x128xf32>
    %cst_3 = arith.constant 0.000000e+00 : f32
    %3 = vector.broadcast %cst_3 : f32 to vector<8x128xf32>
    %4 = arith.maximumf %2, %3 : vector<8x128xf32>
    %c0_4 = arith.constant 0 : index
    %c0_5 = arith.constant 0 : index
    %5 = vector.load %arg3[%c0_4, %c0_5] : memref<128x128xf32, #tpu.memory_space<vmem>>, vector<128x128xf32>
    %cst_6 = arith.constant dense<0.000000e+00> : vector<8x128xf32>
    %6 = tpu.matmul %4, %5, %cst_6 {dimension_numbers = #tpu.dot_dimension_numbers<[1], [0], [0], [1], [0, 0, 1, 1], [], []>} : vector<8x128xf32>, vector<128x128xf32>, vector<8x128xf32> -> vector<8x128xf32>
    %cst_7 = arith.constant 0.000000e+00 : f32
    %7 = vector.broadcast %cst_7 : f32 to vector<8x128xf32>
    %8 = arith.maximumf %6, %7 : vector<8x128xf32>
    %c0_8 = arith.constant 0 : index
    %c0_9 = arith.constant 0 : index
    %9 = vector.load %arg4[%c0_8, %c0_9] : memref<128x128xf32, #tpu.memory_space<vmem>>, vector<128x128xf32>
    %cst_10 = arith.constant dense<0.000000e+00> : vector<8x128xf32>
    %10 = tpu.matmul %8, %9, %cst_10 {dimension_numbers = #tpu.dot_dimension_numbers<[1], [0], [0], [1], [0, 0, 1, 1], [], []>} : vector<8x128xf32>, vector<128x128xf32>, vector<8x128xf32> -> vector<8x128xf32>
    %c0_11 = arith.constant 0 : index
    %c0_12 = arith.constant 0 : index
    %11 = vector.load %arg5[%c0_11, %c0_12] : memref<8x128xf32, #tpu.memory_space<vmem>>, vector<8x128xf32>
    tpu.vector_store %arg5[%c0_11, %c0_12], %10 {strides = array<i32>} : memref<8x128xf32, #tpu.memory_space<vmem>>, vector<8x128xf32>,
    return
  }
  func.func @transform_0(%arg0: i32) -> (i32, i32) {
    %c0_i32 = arith.constant 0 : i32
    %c0_i32_0 = arith.constant 0 : i32
    return %arg0, %c0_i32 : i32, i32
  }
  func.func @transform_1(%arg0: i32) -> (i32, i32) {
    %c0_i32 = arith.constant 0 : i32
    %c0_i32_0 = arith.constant 0 : i32
    %c0_i32_1 = arith.constant 0 : i32
    return %c0_i32, %c0_i32_0 : i32, i32
  }
  func.func @transform_2(%arg0: i32) -> (i32, i32) {
    %c0_i32 = arith.constant 0 : i32
    %c0_i32_0 = arith.constant 0 : i32
    %c0_i32_1 = arith.constant 0 : i32
    return %c0_i32, %c0_i32_0 : i32, i32
  }
  func.func @transform_3(%arg0: i32) -> (i32, i32) {
    %c0_i32 = arith.constant 0 : i32
    %c0_i32_0 = arith.constant 0 : i32
    %c0_i32_1 = arith.constant 0 : i32
    return %c0_i32, %c0_i32_0 : i32, i32
  }
  func.func @transform_4(%arg0: i32) -> (i32, i32) {
    %c0_i32 = arith.constant 0 : i32
    %c0_i32_0 = arith.constant 0 : i32
    return %arg0, %c0_i32 : i32, i32
  }
}

</mosaic_0001>

<llo_original>
// kernel: tpu_custom_call.1
$region0: #{tpu_custom_call.1}
  #allocation0 [shape = 'u32[]', space=smem, size = 0x4, offset = 0x4, fixed_abs, tag = 'smem constant byte address 0x4 - core index']
  #allocation1 [shape = 'u32[144,128]{1,0:T(1,128)}', space=vmem, size = 0x12000, scoped, tag = 'internal scratch']
  %s0 = inlined_call_operand.hbm [shape: f32[8,40], index: 0, kind: input, shape index: {}]
  %s1 = inlined_call_operand.hbm [shape: f32[40,128], index: 1, kind: input, shape index: {}]
  %s2 = inlined_call_operand.hbm [shape: f32[128,128], index: 2, kind: input, shape index: {}]
  %s3 = inlined_call_operand.hbm [shape: f32[128,128], index: 3, kind: input, shape index: {}]
  %s4 = inlined_call_operand.hbm [shape: f32[8,128], index: 4, kind: output, shape index: {}]
  %s5 = sld [smem:[#allocation0]]
  $region42: #{tpu_custom_call.1} parent=0
    _
  %s7 = ssub.s32 1, %s5
  %s8 = scalar_select 0, %s7, %s5
  $region1: #{tpu_custom_call.1} parent=0
    #allocation2 [shape = 'u8[4096]{0}', space=vmem, size = 0x1000, scoped, tag = 'input window, operand 0, single buffered']
    #allocation3 [shape = 's32[1]{0}', space=sflag, size = 0x4, scoped, tag = 'scoped memory for tpu_custom_call.1']
    #allocation4 [shape = 's32[1]{0}', space=sflag, size = 0x4, scoped, tag = 'scoped memory for tpu_custom_call.1']
    #allocation5 [shape = 'u8[20480]{0}', space=vmem, size = 0x5000, scoped, tag = 'input window, operand 1, single buffered']
    #allocation6 [shape = 's32[1]{0}', space=sflag, size = 0x4, scoped, tag = 'scoped memory for tpu_custom_call.1']
    #allocation7 [shape = 'u8[65536]{0}', space=vmem, size = 0x10000, scoped, tag = 'input window, operand 2, single buffered']
    #allocation8 [shape = 'u8[65536]{0}', space=vmem, size = 0x10000, scoped, tag = 'input window, operand 3, single buffered']
    #allocation9 [shape = 's32[1]{0}', space=sflag, size = 0x4, scoped, tag = 'scoped memory for tpu_custom_call.1']
    #allocation10 [shape = 'u8[4096]{0}', space=vmem, size = 0x1000, scoped, tag = 'output window, operand 0, single buffered']
    %9 = vsyncpa [#allocation3], 0
    %10 = vsyncpa [#allocation6], 0
    %11 = vsyncpa [#allocation9], 0
    %12 = vsyncpa [#allocation4], 0
    // Predicated region
    $region2: #{tpu_custom_call.1} parent=1 // pred_check
      _
    $region3: #{tpu_custom_call.1} parent=1 // pred_check_branch
      %14 = sbr.rel (0) target = $region5
    $region4: #{tpu_custom_call.1} parent=1 // pred_region
      %s16 = ssub.s32 128, 128
      %17 = vsyncadd [#allocation3], %s16
      %s19 = sshll.u32 [#allocation2], 4
      %s20 = int_to_ptr.vmem [resolvable:$true] %s19
      %22 = dma.hbm_to_vmem [thread:$0]  %s0, 128, %s20, [#allocation3]
    $region5: #{tpu_custom_call.1} parent=1 // pred_fallthru
      _
    // Predicated region
    $region6: #{tpu_custom_call.1} parent=1 // pred_check
      _
    $region7: #{tpu_custom_call.1} parent=1 // pred_check_branch
      %24 = sbr.rel (0) target = $region9
    $region8: #{tpu_custom_call.1} parent=1 // pred_region
      %s26 = ssub.s32 640, 640
      %27 = vsyncadd [#allocation6], %s26
      %s28 = sshll.u32 [#allocation5], 4
      %s29 = int_to_ptr.vmem [resolvable:$true] %s28
      %34 = dma.hbm_to_vmem [thread:$0]  %s1, 640, %s29, [#allocation6], 128, 128, 8
    $region9: #{tpu_custom_call.1} parent=1 // pred_fallthru
      _
    // Predicated region
    $region10: #{tpu_custom_call.1} parent=1 // pred_check
      _
    $region11: #{tpu_custom_call.1} parent=1 // pred_check_branch
      %36 = sbr.rel (0) target = $region13
    $region12: #{tpu_custom_call.1} parent=1 // pred_region
      %s38 = ssub.s32 2048, 2048
      %39 = vsyncadd [#allocation6], %s38
      %s40 = sshll.u32 [#allocation7], 4
      %s41 = int_to_ptr.vmem [resolvable:$true] %s40
      %46 = dma.hbm_to_vmem [thread:$0]  %s2, 2048, %s41, [#allocation6], 128, 128, 8
    $region13: #{tpu_custom_call.1} parent=1 // pred_fallthru
      _
    // Predicated region
    $region14: #{tpu_custom_call.1} parent=1 // pred_check
      _
    $region15: #{tpu_custom_call.1} parent=1 // pred_check_branch
      %48 = sbr.rel (0) target = $region17
    $region16: #{tpu_custom_call.1} parent=1 // pred_region
      %s50 = ssub.s32 2048, 2048
      %51 = vsyncadd [#allocation9], %s50
      %s52 = sshll.u32 [#allocation8], 4
      %s53 = int_to_ptr.vmem [resolvable:$true] %s52
      %58 = dma.hbm_to_vmem [thread:$0]  %s3, 2048, %s53, [#allocation9], 128, 128, 8
    $region17: #{tpu_custom_call.1} parent=1 // pred_fallthru
      _
    // Predicated region
    $region18: #{tpu_custom_call.1} parent=1 // pred_check
      _
    $region19: #{tpu_custom_call.1} parent=1 // pred_check_branch
      %60 = sbr.rel (0) target = $region21
    $region20: #{tpu_custom_call.1} parent=1 // pred_region
      %61 = dma.done [#allocation3], 128
    $region21: #{tpu_custom_call.1} parent=1 // pred_fallthru
      _
    // Predicated region
    $region22: #{tpu_custom_call.1} parent=1 // pred_check
      _
    $region23: #{tpu_custom_call.1} parent=1 // pred_check_branch
      %63 = sbr.rel (0) target = $region25
    $region24: #{tpu_custom_call.1} parent=1 // pred_region
      %64 = dma.done [#allocation6], 640
    $region25: #{tpu_custom_call.1} parent=1 // pred_fallthru
      _
    // Predicated region
    $region26: #{tpu_custom_call.1} parent=1 // pred_check
      _
    $region27: #{tpu_custom_call.1} parent=1 // pred_check_branch
      %66 = sbr.rel (0) target = $region29
    $region28: #{tpu_custom_call.1} parent=1 // pred_region
      %67 = dma.done [#allocation6], 2048
    $region29: #{tpu_custom_call.1} parent=1 // pred_fallthru
      _
    // Predicated region
    $region30: #{tpu_custom_call.1} parent=1 // pred_check
      _
    $region31: #{tpu_custom_call.1} parent=1 // pred_check_branch
      %69 = sbr.rel (0) target = $region33
    $region32: #{tpu_custom_call.1} parent=1 // pred_region
      %70 = dma.done [#allocation9], 2048
    $region33: #{tpu_custom_call.1} parent=1 // pred_fallthru
      _
    %v71 = vld [vmem:[#allocation2] sm:$0xff]
    %v72 = vld [vmem:[#allocation5] sm:$0xff]
    %v73 = vld [vmem:[#allocation5 + $0x8] sm:$0xff]
    %v74 = vld [vmem:[#allocation5 + $0x10] sm:$0xff]
    %v75 = vld [vmem:[#allocation5 + $0x18] sm:$0xff]
    %v76 = vld [vmem:[#allocation5 + $0x20] sm:$0xff]
    %vm77 = vcmask 326656
    %v79 = vsel %vm77, %v71, 0
    %81 = vmatprep.subr.mxu0 0.0
    %82 = vmatpush1.msra.mxu0 0.0
    %83 = vmatprep.subr.mxu0 0.0
    %84 = vmatpush1.msra.mxu0 0.0
    %85 = vmatprep.subr.mxu0 0.0
    %86 = vmatpush1.msra.mxu0 0.0
    %87 = vmatprep.subr.mxu0 0.0
    %88 = vmatpush1.msra.mxu0 0.0
    %89 = vmatprep.subr.mxu0 0.0
    %90 = vmatpush1.msra.mxu0 0.0
    %91 = vmatprep.subr.mxu0 0.0
    %92 = vmatpush1.msra.mxu0 0.0
    %93 = vmatprep.subr.mxu0 0.0
    %94 = vmatpush1.msra.mxu0 0.0
    %95 = vmatprep.subr.mxu0 0.0
    %96 = vmatpush1.msra.mxu0 0.0
    %97 = vmatprep.subr.mxu0 0.0
    %98 = vmatpush1.msra.mxu0 0.0
    %99 = vmatprep.subr.mxu0 0.0
    %100 = vmatpush1.msra.mxu0 0.0
    %101 = vmatprep.subr.mxu0 0.0
    %102 = vmatpush1.msra.mxu0 0.0
    %103 = vmatprep.subr.mxu0 0.0
    %104 = vmatpush1.msra.mxu0 %v76
    %105 = vmatprep.subr.mxu0 0.0
    %106 = vmatpush1.msra.mxu0 %v75
    %107 = vmatprep.subr.mxu0 0.0
    %108 = vmatpush1.msra.mxu0 %v74
    %109 = vmatprep.subr.mxu0 0.0
    %110 = vmatpush1.msra.mxu0 %v73
    %111 = vmatprep.subr.mxu0 0.0
    %112 = vmatpush1.msra.mxu0 %v72
    %113 = vmatprep.subr.mxu0 0.0
    %114 = vmatpush2.msra.mxu0 0.0
    %115 = vmatprep.subr.mxu0 0.0
    %116 = vmatpush2.msra.mxu0 0.0
    %117 = vmatprep.subr.mxu0 0.0
    %118 = vmatpush2.msra.mxu0 0.0
    %119 = vmatprep.subr.mxu0 0.0
    %120 = vmatpush2.msra.mxu0 0.0
    %121 = vmatprep.subr.mxu0 0.0
    %122 = vmatpush2.msra.mxu0 0.0
    %123 = vmatprep.subr.mxu0 0.0
    %124 = vmatpush2.msra.mxu0 0.0
    %125 = vmatprep.subr.mxu0 0.0
    %126 = vmatpush2.msra.mxu0 0.0
    %127 = vmatprep.subr.mxu0 0.0
    %128 = vmatpush2.msra.mxu0 0.0
    %129 = vmatprep.subr.mxu0 0.0
    %130 = vmatpush2.msra.mxu0 0.0
    %131 = vmatprep.subr.mxu0 0.0
    %132 = vmatpush2.msra.mxu0 0.0
    %133 = vmatprep.subr.mxu0 0.0
    %134 = vmatpush2.msra.mxu0 0.0
    %135 = vmatprep.subr.mxu0 0.0
    %136 = vmatpush2.msra.mxu0 0.0
    %137 = vmatprep.subr.mxu0 0.0
    %138 = vmatpush2.msra.mxu0 0.0
    %139 = vmatprep.subr.mxu0 0.0
    %140 = vmatpush2.msra.mxu0 0.0
    %141 = vmatprep.subr.mxu0 0.0
    %142 = vmatpush2.msra.mxu0 0.0
    %143 = vmatprep.subr.mxu0 0.0
    %144 = vmatpush2.msra.mxu0 0.0
    %145 = vmatprep.mubr.f32.mxu0 0.0
    %146 = vmatmul.mubr.f32.gmra.mxu0 %v79
    %v147 = vpop.f32.mrf.mxu0
    %v148 = vadd.f32 0.0, %v147
    %v149 = vpop.f32.mrf.mxu0
    %150 = vdwg.mxu0
    %v151 = vmax.f32 %v148, 0.0
    %v152 = vld [vmem:[#allocation7] sm:$0xff]
    %v153 = vld [vmem:[#allocation7 + $0x8] sm:$0xff]
    %v154 = vld [vmem:[#allocation7 + $0x10] sm:$0xff]
    %v155 = vld [vmem:[#allocation7 + $0x18] sm:$0xff]
    %v156 = vld [vmem:[#allocation7 + $0x20] sm:$0xff]
    %v157 = vld [vmem:[#allocation7 + $0x28] sm:$0xff]
    %v158 = vld [vmem:[#allocation7 + $0x30] sm:$0xff]
    %v159 = vld [vmem:[#allocation7 + $0x38] sm:$0xff]
    %v160 = vld [vmem:[#allocation7 + $0x40] sm:$0xff]
    %v161 = vld [vmem:[#allocation7 + $0x48] sm:$0xff]
    %v162 = vld [vmem:[#allocation7 + $0x50] sm:$0xff]
    %v163 = vld [vmem:[#allocation7 + $0x58] sm:$0xff]
    %v164 = vld [vmem:[#allocation7 + $0x60] sm:$0xff]
    %v165 = vld [vmem:[#allocation7 + $0x68] sm:$0xff]
    %v166 = vld [vmem:[#allocation7 + $0x70] sm:$0xff]
    %v167 = vld [vmem:[#allocation7 + $0x78] sm:$0xff]
    %168 = vmatprep.subr.mxu0 0.0
    %169 = vmatpush1.msra.mxu0 %v167
    %170 = vmatprep.subr.mxu0 0.0
    %171 = vmatpush1.msra.mxu0 %v166
    %172 = vmatprep.subr.mxu0 0.0
    %173 = vmatpush1.msra.mxu0 %v165
    %174 = vmatprep.subr.mxu0 0.0
    %175 = vmatpush1.msra.mxu0 %v164
    %176 = vmatprep.subr.mxu0 0.0
    %177 = vmatpush1.msra.mxu0 %v163
    %178 = vmatprep.subr.mxu0 0.0
    %179 = vmatpush1.msra.mxu0 %v162
    %180 = vmatprep.subr.mxu0 0.0
    %181 = vmatpush1.msra.mxu0 %v161
    %182 = vmatprep.subr.mxu0 0.0
    %183 = vmatpush1.msra.mxu0 %v160
    %184 = vmatprep.subr.mxu0 0.0
    %185 = vmatpush1.msra.mxu0 %v159
    %186 = vmatprep.subr.mxu0 0.0
    %187 = vmatpush1.msra.mxu0 %v158
    %188 = vmatprep.subr.mxu0 0.0
    %189 = vmatpush1.msra.mxu0 %v157
    %190 = vmatprep.subr.mxu0 0.0
    %191 = vmatpush1.msra.mxu0 %v156
    %192 = vmatprep.subr.mxu0 0.0
    %193 = vmatpush1.msra.mxu0 %v155
    %194 = vmatprep.subr.mxu0 0.0
    %195 = vmatpush1.msra.mxu0 %v154
    %196 = vmatprep.subr.mxu0 0.0
    %197 = vmatpush1.msra.mxu0 %v153
    %198 = vmatprep.subr.mxu0 0.0
    %199 = vmatpush1.msra.mxu0 %v152
    %200 = vmatprep.subr.mxu0 0.0
    %201 = vmatpush2.msra.mxu0 0.0
    %202 = vmatprep.subr.mxu0 0.0
    %203 = vmatpush2.msra.mxu0 0.0
    %204 = vmatprep.subr.mxu0 0.0
    %205 = vmatpush2.msra.mxu0 0.0
    %206 = vmatprep.subr.mxu0 0.0
    %207 = vmatpush2.msra.mxu0 0.0
    %208 = vmatprep.subr.mxu0 0.0
    %209 = vmatpush2.msra.mxu0 0.0
    %210 = vmatprep.subr.mxu0 0.0
    %211 = vmatpush2.msra.mxu0 0.0
    %212 = vmatprep.subr.mxu0 0.0
    %213 = vmatpush2.msra.mxu0 0.0
    %214 = vmatprep.subr.mxu0 0.0
    %215 = vmatpush2.msra.mxu0 0.0
    %216 = vmatprep.subr.mxu0 0.0
    %217 = vmatpush2.msra.mxu0 0.0
    %218 = vmatprep.subr.mxu0 0.0
    %219 = vmatpush2.msra.mxu0 0.0
    %220 = vmatprep.subr.mxu0 0.0
    %221 = vmatpush2.msra.mxu0 0.0
    %222 = vmatprep.subr.mxu0 0.0
    %223 = vmatpush2.msra.mxu0 0.0
    %224 = vmatprep.subr.mxu0 0.0
    %225 = vmatpush2.msra.mxu0 0.0
    %226 = vmatprep.subr.mxu0 0.0
    %227 = vmatpush2.msra.mxu0 0.0
    %228 = vmatprep.subr.mxu0 0.0
    %229 = vmatpush2.msra.mxu0 0.0
    %230 = vmatprep.subr.mxu0 0.0
    %231 = vmatpush2.msra.mxu0 0.0
    %232 = vmatprep.mubr.f32.mxu0 0.0
    %233 = vmatmul.mubr.f32.gmra.mxu0 %v151
    %v234 = vpop.f32.mrf.mxu0
    %v235 = vadd.f32 0.0, %v234
    %v236 = vpop.f32.mrf.mxu0
    %237 = vdwg.mxu0
    %v238 = vmax.f32 %v235, 0.0
    %v239 = vld [vmem:[#allocation8] sm:$0xff]
    %v240 = vld [vmem:[#allocation8 + $0x8] sm:$0xff]
    %v241 = vld [vmem:[#allocation8 + $0x10] sm:$0xff]
    %v242 = vld [vmem:[#allocation8 + $0x18] sm:$0xff]
    %v243 = vld [vmem:[#allocation8 + $0x20] sm:$0xff]
    %v244 = vld [vmem:[#allocation8 + $0x28] sm:$0xff]
    %v245 = vld [vmem:[#allocation8 + $0x30] sm:$0xff]
    %v246 = vld [vmem:[#allocation8 + $0x38] sm:$0xff]
    %v247 = vld [vmem:[#allocation8 + $0x40] sm:$0xff]
    %v248 = vld [vmem:[#allocation8 + $0x48] sm:$0xff]
    %v249 = vld [vmem:[#allocation8 + $0x50] sm:$0xff]
    %v250 = vld [vmem:[#allocation8 + $0x58] sm:$0xff]
    %v251 = vld [vmem:[#allocation8 + $0x60] sm:$0xff]
    %v252 = vld [vmem:[#allocation8 + $0x68] sm:$0xff]
    %v253 = vld [vmem:[#allocation8 + $0x70] sm:$0xff]
    %v254 = vld [vmem:[#allocation8 + $0x78] sm:$0xff]
    %255 = vmatprep.subr.mxu0 0.0
    %256 = vmatpush1.msra.mxu0 %v254
    %257 = vmatprep.subr.mxu0 0.0
    %258 = vmatpush1.msra.mxu0 %v253
    %259 = vmatprep.subr.mxu0 0.0
    %260 = vmatpush1.msra.mxu0 %v252
    %261 = vmatprep.subr.mxu0 0.0
    %262 = vmatpush1.msra.mxu0 %v251
    %263 = vmatprep.subr.mxu0 0.0
    %264 = vmatpush1.msra.mxu0 %v250
    %265 = vmatprep.subr.mxu0 0.0
    %266 = vmatpush1.msra.mxu0 %v249
    %267 = vmatprep.subr.mxu0 0.0
    %268 = vmatpush1.msra.mxu0 %v248
    %269 = vmatprep.subr.mxu0 0.0
    %270 = vmatpush1.msra.mxu0 %v247
    %271 = vmatprep.subr.mxu0 0.0
    %272 = vmatpush1.msra.mxu0 %v246
    %273 = vmatprep.subr.mxu0 0.0
    %274 = vmatpush1.msra.mxu0 %v245
    %275 = vmatprep.subr.mxu0 0.0
    %276 = vmatpush1.msra.mxu0 %v244
    %277 = vmatprep.subr.mxu0 0.0
    %278 = vmatpush1.msra.mxu0 %v243
    %279 = vmatprep.subr.mxu0 0.0
    %280 = vmatpush1.msra.mxu0 %v242
    %281 = vmatprep.subr.mxu0 0.0
    %282 = vmatpush1.msra.mxu0 %v241
    %283 = vmatprep.subr.mxu0 0.0
    %284 = vmatpush1.msra.mxu0 %v240
    %285 = vmatprep.subr.mxu0 0.0
    %286 = vmatpush1.msra.mxu0 %v239
    %287 = vmatprep.subr.mxu0 0.0
    %288 = vmatpush2.msra.mxu0 0.0
    %289 = vmatprep.subr.mxu0 0.0
    %290 = vmatpush2.msra.mxu0 0.0
    %291 = vmatprep.subr.mxu0 0.0
    %292 = vmatpush2.msra.mxu0 0.0
    %293 = vmatprep.subr.mxu0 0.0
    %294 = vmatpush2.msra.mxu0 0.0
    %295 = vmatprep.subr.mxu0 0.0
    %296 = vmatpush2.msra.mxu0 0.0
    %297 = vmatprep.subr.mxu0 0.0
    %298 = vmatpush2.msra.mxu0 0.0
    %299 = vmatprep.subr.mxu0 0.0
    %300 = vmatpush2.msra.mxu0 0.0
    %301 = vmatprep.subr.mxu0 0.0
    %302 = vmatpush2.msra.mxu0 0.0
    %303 = vmatprep.subr.mxu0 0.0
    %304 = vmatpush2.msra.mxu0 0.0
    %305 = vmatprep.subr.mxu0 0.0
    %306 = vmatpush2.msra.mxu0 0.0
    %307 = vmatprep.subr.mxu0 0.0
    %308 = vmatpush2.msra.mxu0 0.0
    %309 = vmatprep.subr.mxu0 0.0
    %310 = vmatpush2.msra.mxu0 0.0
    %311 = vmatprep.subr.mxu0 0.0
    %312 = vmatpush2.msra.mxu0 0.0
    %313 = vmatprep.subr.mxu0 0.0
    %314 = vmatpush2.msra.mxu0 0.0
    %315 = vmatprep.subr.mxu0 0.0
    %316 = vmatpush2.msra.mxu0 0.0
    %317 = vmatprep.subr.mxu0 0.0
    %318 = vmatpush2.msra.mxu0 0.0
    %319 = vmatprep.mubr.f32.mxu0 0.0
    %320 = vmatmul.mubr.f32.gmra.mxu0 %v238
    %v321 = vpop.f32.mrf.mxu0
    %v322 = vadd.f32 0.0, %v321
    %v323 = vpop.f32.mrf.mxu0
    %324 = vdwg.mxu0
    %325 = vst [vmem:[#allocation10] sm:$0xff] %v322
    // Predicated region
    $region34: #{tpu_custom_call.1} parent=1 // pred_check
      _
    $region35: #{tpu_custom_call.1} parent=1 // pred_check_branch
      %327 = sbr.rel (0) target = $region37
    $region36: #{tpu_custom_call.1} parent=1 // pred_region
      %s329 = ssub.s32 128, 128
      %330 = vsyncadd [#allocation4], %s329
      %s332 = sshll.u32 [#allocation10], 4
      %s333 = int_to_ptr.vmem [resolvable:$true] %s332
      %335 = dma.vmem_to_hbm [thread:$0]  %s333, 128, %s4, [#allocation4]
    $region37: #{tpu_custom_call.1} parent=1 // pred_fallthru
      _
    // Predicated region
    $region38: #{tpu_custom_call.1} parent=1 // pred_check
      _
    $region39: #{tpu_custom_call.1} parent=1 // pred_check_branch
      %337 = sbr.rel (0) target = $region41
    $region40: #{tpu_custom_call.1} parent=1 // pred_region
      %338 = dma.done [#allocation4], 128
    $region41: #{tpu_custom_call.1} parent=1 // pred_fallthru
      _
    %339 = vsyncpa [#allocation3], 1
    %340 = vsyncpa [#allocation6], 1
    %341 = vsyncpa [#allocation9], 1
    %342 = vsyncpa [#allocation4], 1

</llo_original>
